<compile_context>
chip_gen: v7x
topology: tpu7x:2x2x1
jax: 0.10.0
libtpu: 0.0.40
codegen_flags: <defaults>
</compile_context>

<pallas_src>
import jax
import jax.numpy as jnp
from jax.experimental import pallas as pl
from jax.experimental.pallas import tpu as pltpu

_MAX_TILE_ROWS = 2048


def _round_up(n, m):
    return ((n + m - 1) // m) * m


def _vmem_capacity_bytes():
    """Physical VMEM per core, with conservative fallbacks."""
    try:
        cap = int(pltpu.get_tpu_info().vmem_capacity_bytes)
        if cap > 0:
            return cap
    except Exception:
        pass
    try:
        kind = jax.devices()[0].device_kind.lower()
        if "v7" in kind:
            return 64 << 20
        return 128 << 20          # v5e / v6e class
    except Exception:
        return 64 << 20           # safe default


def _mxu_align():
    """Feature-axis padding multiple: 256 for 256x256 MXUs (v6e/v7x), else 128."""
    try:
        kind = jax.devices()[0].device_kind.lower()
    except Exception:
        return 128
    if "v6" in kind or "v7" in kind or "trillium" in kind:
        return 256
    return 128


def _plan(P, H, Hp, x_dtype, out_dtype, fixed_bytes, n_outputs, temp_per_row):
    """Pick a row tile and an explicit VMEM limit for one kernel variant.

    fixed_bytes   : bytes of VMEM-resident (constant-index) weight/bias blocks,
                    already including the x2 pipeline-buffer factor.
    temp_per_row  : bytes of in-kernel temporaries per row of the tile.
    """
    xb = jnp.dtype(x_dtype).itemsize
    ob = jnp.dtype(out_dtype).itemsize
    sub = 8 if xb >= 4 else 16                      # sublane multiple (f32 / bf16)

    cap = _vmem_capacity_bytes()
    budget = int(cap * 0.6)                         # per-generation budget

    # Double-buffered input + output tiles + in-kernel temporaries, per row.
    per_row = 2 * xb * H + 2 * n_outputs * ob * Hp + temp_per_row
    avail = budget - fixed_bytes
    if avail < per_row * sub:
        # TODO(synk): weights exceed the budget -> an N-split weight grid would
        # be needed; fall back to the minimum legal row tile.
        avail = per_row * sub

    tile = max(sub, min(_MAX_TILE_ROWS, avail // per_row))
    tile = (tile // sub) * sub
    if P >= 2 * sub:
        # Guarantee >= 2 grid steps so "parallel" can use both v7x TensorCores.
        tile = min(tile, _round_up(pl.cdiv(P, 2), sub))
    if tile >= P:
        tile = P                                    # full-extent row block (legal)

    est = fixed_bytes + tile * per_row
    vmem_limit = min(int(cap * 0.75), max(est + est // 2 + (4 << 20), 32 << 20))
    return tile, vmem_limit


# ----------------------------- Pallas kernels ------------------------------ #

def _fc_kernel(x_ref, w_ref, b_ref, o_ref):
    # out = relu(x @ W + b): bf16 MXU operands, f32 accumulate, f32 epilogue.
    x = x_ref[...].astype(w_ref.dtype)              # no-op if x already bf16
    y = jnp.dot(x, w_ref[...], preferred_element_type=jnp.float32)
    y = y + b_ref[...]                               # (1, Hp) broadcast, f32
    o_ref[...] = jnp.maximum(y, 0.0).astype(o_ref.dtype)


def _mlp_kernel(x_ref, w1_ref, b1_ref, w2_ref, b2_ref, o_ref):
    # out = relu(x @ W1 + b1) @ W2 + b2 : two MXU matmuls fused per row tile.
    x = x_ref[...].astype(w1_ref.dtype)
    h = jnp.dot(x, w1_ref[...], preferred_element_type=jnp.float32) + b1_ref[...]
    h = jnp.maximum(h, 0.0)
    y = jnp.dot(h.astype(w2_ref.dtype), w2_ref[...],
                preferred_element_type=jnp.float32) + b2_ref[...]
    o_ref[...] = y.astype(o_ref.dtype)


def _fc_mlp_kernel(x_ref, w1_ref, b1_ref, w2_ref, b2_ref, fc_ref, mlp_ref):
    # Fused NAS-candidate evaluation: one HBM read of x, two outputs.
    x = x_ref[...].astype(w1_ref.dtype)
    h = jnp.dot(x, w1_ref[...], preferred_element_type=jnp.float32) + b1_ref[...]
    h = jnp.maximum(h, 0.0)
    fc_ref[...] = h.astype(fc_ref.dtype)
    y = jnp.dot(h.astype(w2_ref.dtype), w2_ref[...],
                preferred_element_type=jnp.float32) + b2_ref[...]
    mlp_ref[...] = y.astype(mlp_ref.dtype)


# ------------------------------ host wrappers ------------------------------ #

def _row_spec(tile_p, cols):
    return pl.BlockSpec((tile_p, cols), lambda i: (i, 0))


def _const_spec(shape):
    # Constant index_map -> block stays resident across the row grid (no re-DMA).
    return pl.BlockSpec(shape, lambda i: (0, 0))


@jax.jit
def _pi_fc(x, w, b):
    P, H = x.shape
    Hp = w.shape[1]
    fixed = 2 * (w.size * jnp.dtype(w.dtype).itemsize
                 + b.size * jnp.dtype(b.dtype).itemsize)
    temp_per_row = 2 * H + 8 * Hp                    # bf16 x copy + f32 y / relu
    tile_p, vlim = _plan(P, H, Hp, x.dtype, x.dtype, fixed, 1, temp_per_row)
    out = pl.pallas_call(
        _fc_kernel,
        out_shape=jax.ShapeDtypeStruct((P, Hp), x.dtype),
        grid=(pl.cdiv(P, tile_p),),
        in_specs=[_row_spec(tile_p, H),
                  _const_spec((H, Hp)),
                  _const_spec((1, Hp))],
        out_specs=_row_spec(tile_p, Hp),
        compiler_params=pltpu.CompilerParams(
            dimension_semantics=("parallel",),
            vmem_limit_bytes=vlim),
    )(x, w, b)
    return out if Hp == H else out[:, :H]


@jax.jit
def _pi_mlp(x, w1, b1, w2, b2):
    P, H = x.shape
    Hp = w1.shape[1]
    fixed = 2 * ((w1.size + w2.size) * 2 + (b1.size + b2.size) * 4)
    temp_per_row = 2 * H + 12 * Hp                   # bf16 x, f32 h, bf16 h, f32 y
    tile_p, vlim = _plan(P, H, Hp, x.dtype, x.dtype, fixed, 1, temp_per_row)
    out = pl.pallas_call(
        _mlp_kernel,
        out_shape=jax.ShapeDtypeStruct((P, Hp), x.dtype),
        grid=(pl.cdiv(P, tile_p),),
        in_specs=[_row_spec(tile_p, H),
                  _const_spec((H, Hp)), _const_spec((1, Hp)),
                  _const_spec((Hp, Hp)), _const_spec((1, Hp))],
        out_specs=_row_spec(tile_p, Hp),
        compiler_params=pltpu.CompilerParams(
            dimension_semantics=("parallel",),
            vmem_limit_bytes=vlim),
    )(x, w1, b1, w2, b2)
    return out if Hp == H else out[:, :H]


@jax.jit
def pi_fc_and_mlp(x, w1, b1, w2, b2):
    """Evaluate both 'fc' and 'mlp' candidates sharing one HBM read of x."""
    P, H = x.shape
    Hp = w1.shape[1]
    fixed = 2 * ((w1.size + w2.size) * 2 + (b1.size + b2.size) * 4)
    temp_per_row = 2 * H + 12 * Hp
    tile_p, vlim = _plan(P, H, Hp, x.dtype, x.dtype, fixed, 2, temp_per_row)
    row_out = _row_spec(tile_p, Hp)
    fc, mlp = pl.pallas_call(
        _fc_mlp_kernel,
        out_shape=(jax.ShapeDtypeStruct((P, Hp), x.dtype),
                   jax.ShapeDtypeStruct((P, Hp), x.dtype)),
        grid=(pl.cdiv(P, tile_p),),
        in_specs=[_row_spec(tile_p, H),
                  _const_spec((H, Hp)), _const_spec((1, Hp)),
                  _const_spec((Hp, Hp)), _const_spec((1, Hp))],
        out_specs=(row_out, row_out),
        compiler_params=pltpu.CompilerParams(
            dimension_semantics=("parallel",),
            vmem_limit_bytes=vlim),
    )(x, w1, b1, w2, b2)
    if Hp != H:
        fc, mlp = fc[:, :H], mlp[:, :H]
    return fc, mlp


class PiOp:
    """JAX/Pallas port of PiOp: dispatch a pair-info op over (batch_pair_num, hidden)."""

    def __init__(self, primitive, hidden_dim, batch_pair_num, key=None,
                 param_dtype=jnp.bfloat16):
        self.primitive = primitive
        self.hidden_dim = hidden_dim
        self.batch_pair_num = batch_pair_num
        if key is None:
            key = jax.random.PRNGKey(42)   # deterministic synthetic init
        k1, k2, k3, k4 = jax.random.split(key, 4)

        H = hidden_dim
        # Lane-dense output axis: keep H if already lane-aligned (no pad / no
        # output slice), otherwise pad to the MXU-friendly multiple (256 on
        # v6e/v7x, 128 otherwise). Zero padding is mathematically exact.
        Hp = H if H % 128 == 0 else _round_up(H, _mxu_align())
        self.hidden_pad = Hp
        scale = 1.0 / jnp.sqrt(jnp.float32(H))

        # W1: (H, Hp)  — K unpadded (matches unpadded x), N padded lane-dense.
        w1 = jax.random.normal(k1, (H, H), jnp.float32) * scale
        self.w1 = jnp.pad(w1, ((0, 0), (0, Hp - H))).astype(param_dtype)
        # W2: (Hp, Hp) — padded rows are zero (they multiply h's zero pad cols).
        w2 = jax.random.normal(k2, (H, H), jnp.float32) * scale
        self.w2 = jnp.pad(w2, ((0, Hp - H), (0, Hp - H))).astype(param_dtype)
        # Biases stay f32 (epilogue is f32 — v5e has no bf16 VPU); zero-padded.
        b1 = jax.random.normal(k3, (1, H), jnp.float32) * 0.1
        self.b1 = jnp.pad(b1, ((0, 0), (0, Hp - H)))
        b2 = jax.random.normal(k4, (1, H), jnp.float32) * 0.1
        self.b2 = jnp.pad(b2, ((0, 0), (0, Hp - H)))

    def __call__(self, pair_info_embed):
        x = pair_info_embed
        if self.primitive == 'identity':
            return x                        # no kernel: let XLA handle it
        if self.primitive == 'zero':
            return x * 0                    # matches torch x.mul(0.) (NaN propagation)
        if self.primitive == 'fc':
            return _pi_fc(x, self.w1, self.b1)
        if self.primitive == 'mlp':
            return _pi_mlp(x, self.w1, self.b1, self.w2, self.b2)
        raise ValueError(f"unknown primitive {self.primitive!r}")


# ----------------------- pure-JAX reference (testing) ----------------------- #

def _ref_fc(x, w1, b1):
    H = x.shape[1]
    h = jnp.dot(x.astype(w1.dtype), w1, preferred_element_type=jnp.float32) + b1
    h = jnp.maximum(h, 0.0)
    return h[:, :H].astype(x.dtype)


def _ref_mlp(x, w1, b1, w2, b2):
    H = x.shape[1]
    h = jnp.dot(x.astype(w1.dtype), w1, preferred_element_type=jnp.float32) + b1
    h = jnp.maximum(h, 0.0)
    y = jnp.dot(h.astype(w2.dtype), w2, preferred_element_type=jnp.float32) + b2
    return y[:, :H].astype(x.dtype)


def _ref(op: PiOp, x):
    if op.primitive == 'identity':
        return x
    if op.primitive == 'zero':
        return x * 0
    if op.primitive == 'fc':
        return _ref_fc(x, op.w1, op.b1)
    return _ref_mlp(x, op.w1, op.b1, op.w2, op.b2)


if __name__ == "__main__":
    batch_pair_num = 8
    hidden_dim = 32

    key = jax.random.PRNGKey(0)
    x = jax.random.normal(key, (batch_pair_num, hidden_dim), jnp.float32)

    ok = True
    ops = {}
    for prim in ('fc', 'mlp', 'identity', 'zero'):
        op = PiOp(prim, hidden_dim, batch_pair_num)
        ops[prim] = op
        out = jax.block_until_ready(op(x))
        ref = _ref(op, x)
        if out.shape != (batch_pair_num, hidden_dim):
            ok = False
        if not jnp.allclose(out.astype(jnp.float32), ref.astype(jnp.float32),
                            atol=1e-2, rtol=1e-2):
            ok = False

    # Fused fc+mlp candidate evaluation (shares a single HBM read of x).
    op = ops['mlp']
    fc_out, mlp_out = jax.block_until_ready(
        pi_fc_and_mlp(x, op.w1, op.b1, op.w2, op.b2))
    if not jnp.allclose(fc_out.astype(jnp.float32),
                        _ref_fc(x, op.w1, op.b1).astype(jnp.float32),
                        atol=1e-2, rtol=1e-2):
        ok = False
    if not jnp.allclose(mlp_out.astype(jnp.float32),
                        _ref_mlp(x, op.w1, op.b1, op.w2, op.b2).astype(jnp.float32),
                        atol=1e-2, rtol=1e-2):
        ok = False

    # bf16 activation path (half the HBM bytes in the memory-bound regime).
    x16 = x.astype(jnp.bfloat16)
    out16 = jax.block_until_ready(_pi_fc(x16, op.w1, op.b1))
    ref16 = _ref_fc(x16, op.w1, op.b1)
    if out16.shape != (batch_pair_num, hidden_dim):
        ok = False
    if not jnp.allclose(out16.astype(jnp.float32), ref16.astype(jnp.float32),
                        atol=5e-2, rtol=5e-2):
        ok = False

    if ok:
        print("KERNEL_OK")
    else:
        print("KERNEL_MISMATCH")
</pallas_src>

<mosaic_0001>
module attributes {stable_mosaic.version = 11 : i64} {
  func.func @_fc_kernel(%arg0: i32, %arg1: memref<8x32xf32, #tpu.memory_space<vmem>>, %arg2: memref<32x128xbf16, #tpu.memory_space<vmem>>, %arg3: memref<1x128xf32, #tpu.memory_space<vmem>>, %arg4: memref<8x128xf32, #tpu.memory_space<vmem>>) attributes {dimension_semantics = [#tpu.dimension_semantics<parallel>], iteration_bounds = array<i64: 1>, scalar_prefetch = 0 : i64, scratch_operands = 0 : i64, tpu.core_type = #tpu.core_type<tc>, window_params = [{transform_indices = @transform_0, window_bounds = array<i64: 8, 32>}, {pipeline_mode = #tpu.pipeline_mode<synchronous>, transform_indices = @transform_1, window_bounds = array<i64: 32, 128>}, {pipeline_mode = #tpu.pipeline_mode<synchronous>, transform_indices = @transform_2, window_bounds = array<i64: 1, 128>}, {transform_indices = @transform_3, window_bounds = array<i64: 8, 128>}]} {
    %c0 = arith.constant 0 : index
    %c0_0 = arith.constant 0 : index
    %0 = vector.load %arg1[%c0, %c0_0] : memref<8x32xf32, #tpu.memory_space<vmem>>, vector<8x32xf32>
    %1 = arith.truncf %0 : vector<8x32xf32> to vector<8x32xbf16>
    %c0_1 = arith.constant 0 : index
    %c0_2 = arith.constant 0 : index
    %2 = vector.load %arg2[%c0_1, %c0_2] : memref<32x128xbf16, #tpu.memory_space<vmem>>, vector<32x128xbf16>
    %cst = arith.constant dense<0.000000e+00> : vector<8x128xf32>
    %3 = tpu.matmul %1, %2, %cst {dimension_numbers = #tpu.dot_dimension_numbers<[1], [0], [0], [1], [0, 0, 1, 1], [], []>} : vector<8x32xbf16>, vector<32x128xbf16>, vector<8x128xf32> -> vector<8x128xf32>
    %c0_3 = arith.constant 0 : index
    %c0_4 = arith.constant 0 : index
    %4 = vector.load %arg3[%c0_3, %c0_4] : memref<1x128xf32, #tpu.memory_space<vmem>>, vector<1x128xf32>
    %5 = vector.broadcast %4 : vector<1x128xf32> to vector<8x128xf32>
    %6 = arith.addf %3, %5 : vector<8x128xf32>
    %cst_5 = arith.constant 0.000000e+00 : f32
    %7 = vector.broadcast %cst_5 : f32 to vector<8x128xf32>
    %8 = arith.maximumf %6, %7 : vector<8x128xf32>
    %c0_6 = arith.constant 0 : index
    %c0_7 = arith.constant 0 : index
    %9 = vector.load %arg4[%c0_6, %c0_7] : memref<8x128xf32, #tpu.memory_space<vmem>>, vector<8x128xf32>
    tpu.vector_store %arg4[%c0_6, %c0_7], %8 {strides = array<i32>} : memref<8x128xf32, #tpu.memory_space<vmem>>, vector<8x128xf32>,
    return
  }
  func.func @transform_0(%arg0: i32) -> (i32, i32) {
    %c0_i32 = arith.constant 0 : i32
    %c0_i32_0 = arith.constant 0 : i32
    return %arg0, %c0_i32 : i32, i32
  }
  func.func @transform_1(%arg0: i32) -> (i32, i32) {
    %c0_i32 = arith.constant 0 : i32
    %c0_i32_0 = arith.constant 0 : i32
    %c0_i32_1 = arith.constant 0 : i32
    return %c0_i32, %c0_i32_0 : i32, i32
  }
  func.func @transform_2(%arg0: i32) -> (i32, i32) {
    %c0_i32 = arith.constant 0 : i32
    %c0_i32_0 = arith.constant 0 : i32
    %c0_i32_1 = arith.constant 0 : i32
    return %c0_i32, %c0_i32_0 : i32, i32
  }
  func.func @transform_3(%arg0: i32) -> (i32, i32) {
    %c0_i32 = arith.constant 0 : i32
    %c0_i32_0 = arith.constant 0 : i32
    return %arg0, %c0_i32 : i32, i32
  }
}

</mosaic_0001>

<llo_original>
// kernel: _pi_fc.1
$region0: #{_pi_fc.1}
  #allocation0 [shape = 'u32[]', space=smem, size = 0x4, offset = 0x4, fixed_abs, tag = 'smem constant byte address 0x4 - core index']
  #allocation1 [shape = 'u32[144,128]{1,0:T(1,128)}', space=vmem, size = 0x12000, scoped, tag = 'internal scratch']
  %s0 = inlined_call_operand.hbm [shape: f32[8,32], index: 0, kind: input, shape index: {}]
  %s1 = inlined_call_operand.hbm [shape: bf16[32,128], index: 1, kind: input, shape index: {}]
  %s2 = inlined_call_operand.vmem [shape: f32[1,128], index: 2, kind: input, shape index: {}]
  %s3 = inlined_call_operand.hbm [shape: f32[8,128], index: 3, kind: output, shape index: {}]
  %s4 = sld [smem:[#allocation0]]
  $region30: #{_pi_fc.1} parent=0
    _
  %s6 = ssub.s32 1, %s4
  %s7 = scalar_select 0, %s6, %s4
  $region1: #{_pi_fc.1} parent=0
    #allocation2 [shape = 'u8[4096]{0}', space=vmem, size = 0x1000, scoped, tag = 'input window, operand 0, single buffered']
    #allocation3 [shape = 's32[1]{0}', space=sflag, size = 0x4, scoped, tag = 'scoped memory for _pi_fc.1']
    #allocation4 [shape = 's32[1]{0}', space=sflag, size = 0x4, scoped, tag = 'scoped memory for _pi_fc.1']
    #allocation5 [shape = 'u8[8192]{0}', space=vmem, size = 0x2000, scoped, tag = 'input window, operand 1, single buffered']
    #allocation6 [shape = 's32[1]{0}', space=sflag, size = 0x4, scoped, tag = 'scoped memory for _pi_fc.1']
    #allocation7 [shape = 'u8[4096]{0}', space=vmem, size = 0x1000, scoped, tag = 'output window, operand 0, single buffered']
    %8 = vsyncpa [#allocation3], 0
    %9 = vsyncpa [#allocation6], 0
    %10 = vsyncpa [#allocation4], 0
    // Predicated region
    $region2: #{_pi_fc.1} parent=1 // pred_check
      _
    $region3: #{_pi_fc.1} parent=1 // pred_check_branch
      %12 = sbr.rel (0) target = $region5
    $region4: #{_pi_fc.1} parent=1 // pred_region
      %s14 = ssub.s32 128, 128
      %15 = vsyncadd [#allocation3], %s14
      %s17 = sshll.u32 [#allocation2], 4
      %s18 = int_to_ptr.vmem [resolvable:$true] %s17
      %20 = dma.hbm_to_vmem [thread:$0]  %s0, 128, %s18, [#allocation3]
    $region5: #{_pi_fc.1} parent=1 // pred_fallthru
      _
    // Predicated region
    $region6: #{_pi_fc.1} parent=1 // pred_check
      _
    $region7: #{_pi_fc.1} parent=1 // pred_check_branch
      %22 = sbr.rel (0) target = $region9
    $region8: #{_pi_fc.1} parent=1 // pred_region
      %s24 = ssub.s32 256, 256
      %25 = vsyncadd [#allocation6], %s24
      %s26 = sshll.u32 [#allocation5], 4
      %s27 = int_to_ptr.vmem [resolvable:$true] %s26
      %32 = dma.hbm_to_vmem [thread:$0]  %s1, 256, %s27, [#allocation6], 64, 64, 4
    $region9: #{_pi_fc.1} parent=1 // pred_fallthru
      _
    // Predicated region
    $region10: #{_pi_fc.1} parent=1 // pred_check
      _
    $region11: #{_pi_fc.1} parent=1 // pred_check_branch
      %34 = sbr.rel (0) target = $region13
    $region12: #{_pi_fc.1} parent=1 // pred_region
      _
    $region13: #{_pi_fc.1} parent=1 // pred_fallthru
      _
    // Predicated region
    $region14: #{_pi_fc.1} parent=1 // pred_check
      _
    $region15: #{_pi_fc.1} parent=1 // pred_check_branch
      %36 = sbr.rel (0) target = $region17
    $region16: #{_pi_fc.1} parent=1 // pred_region
      %37 = dma.done [#allocation3], 128
    $region17: #{_pi_fc.1} parent=1 // pred_fallthru
      _
    // Predicated region
    $region18: #{_pi_fc.1} parent=1 // pred_check
      _
    $region19: #{_pi_fc.1} parent=1 // pred_check_branch
      %39 = sbr.rel (0) target = $region21
    $region20: #{_pi_fc.1} parent=1 // pred_region
      %40 = dma.done [#allocation6], 256
    $region21: #{_pi_fc.1} parent=1 // pred_fallthru
      _
    %v42 = vld [vmem:[#allocation2] sm:$0xff]
    %v43 = vpack.c.bf16 %v42, %v42
    %v44 = vld [vmem:[#allocation5] sm:$0xf]
    %v45 = vld [vmem:[#allocation5 + $0x4] sm:$0xf]
    %v46 = vld [vmem:[#allocation5 + $0x8] sm:$0xf]
    %v47 = vld [vmem:[#allocation5 + $0xc] sm:$0xf]
    %v48 = vld [vmem:[%s2] sm:$0x1]
    %v50 = vlaneseq
    %v51 = vshrl.u32 %v50, 7
    %v52 = vsub.s32 0, %v51
    %v53 = vrot.slane %v48, %v52
    %v59 = vunpack.c.l.b16 %v44
    %v60 = vunpack.c.l.b16 %v45
    %v61 = vunpack.c.l.b16 %v46
    %v62 = vunpack.c.l.b16 %v47
    %v63 = vpack.c.b16 %v60, %v59
    %v64 = vpack.c.b16 %v62, %v61
    %vm67 = vcmask 261120
    %v69 = vsel %vm67, %v43, 0
    %71 = vmatprep.subr.bf16.mxu0 0
    %72 = vmatpush1.bf16.msra.mxu0 %v63
    %73 = vmatprep.subr.bf16.mxu0 0
    %74 = vmatpush1.bf16.msra.mxu0 %v64
    %75 = vmatprep.subr.bf16.mxu0 0
    %76 = vmatpush1.bf16.msra.mxu0 0
    %77 = vmatprep.subr.bf16.mxu0 0
    %78 = vmatpush1.bf16.msra.mxu0 0
    %79 = vmatprep.subr.bf16.mxu0 0
    %80 = vmatpush1.bf16.msra.mxu0 0
    %81 = vmatprep.subr.bf16.mxu0 0
    %82 = vmatpush1.bf16.msra.mxu0 0
    %83 = vmatprep.subr.bf16.mxu0 0
    %84 = vmatpush1.bf16.msra.mxu0 0
    %85 = vmatprep.subr.bf16.mxu0 0
    %86 = vmatpush1.bf16.msra.mxu0 0
    %87 = vmatprep.subr.bf16.mxu0 0
    %88 = vmatpush1.bf16.msra.mxu0 0
    %89 = vmatprep.subr.bf16.mxu0 0
    %90 = vmatpush1.bf16.msra.mxu0 0
    %91 = vmatprep.subr.bf16.mxu0 0
    %92 = vmatpush1.bf16.msra.mxu0 0
    %93 = vmatprep.subr.bf16.mxu0 0
    %94 = vmatpush1.bf16.msra.mxu0 0
    %95 = vmatprep.subr.bf16.mxu0 0
    %96 = vmatpush1.bf16.msra.mxu0 0
    %97 = vmatprep.subr.bf16.mxu0 0
    %98 = vmatpush1.bf16.msra.mxu0 0
    %99 = vmatprep.subr.bf16.mxu0 0
    %100 = vmatpush1.bf16.msra.mxu0 0
    %101 = vmatprep.subr.bf16.mxu0 0
    %102 = vmatpush1.bf16.msra.mxu0 0
    %103 = vmatprep.mubr.bf16.mxu0 0
    %104 = vmatmul.mubr.bf16.gmra.mrb[0].mxu0 %v69
    %v105 = vpop.f32.mrb[0].mxu0
    %v106 = vadd.f32 %v53, %v105
    %v107 = vpop.f32.mrb[0].mxu0
    %v108 = vpop.f32.mrb[0].mxu0
    %v109 = vpop.f32.mrb[0].mxu0
    %110 = vdwg.mxu0
    %v111 = vmax.f32 %v106, 0.0
    %112 = vst [vmem:[#allocation7] sm:$0xff] %v111
    // Predicated region
    $region22: #{_pi_fc.1} parent=1 // pred_check
      _
    $region23: #{_pi_fc.1} parent=1 // pred_check_branch
      %114 = sbr.rel (0) target = $region25
    $region24: #{_pi_fc.1} parent=1 // pred_region
      %s116 = ssub.s32 128, 128
      %117 = vsyncadd [#allocation4], %s116
      %s119 = sshll.u32 [#allocation7], 4
      %s120 = int_to_ptr.vmem [resolvable:$true] %s119
      %122 = dma.vmem_to_hbm [thread:$0]  %s120, 128, %s3, [#allocation4]
    $region25: #{_pi_fc.1} parent=1 // pred_fallthru
      _
    // Predicated region
    $region26: #{_pi_fc.1} parent=1 // pred_check
      _
    $region27: #{_pi_fc.1} parent=1 // pred_check_branch
      %124 = sbr.rel (0) target = $region29
    $region28: #{_pi_fc.1} parent=1 // pred_region
      %125 = dma.done [#allocation4], 128
    $region29: #{_pi_fc.1} parent=1 // pred_fallthru
      _
    %126 = vsyncpa [#allocation3], 1
    %127 = vsyncpa [#allocation6], 1
    %128 = vsyncpa [#allocation4], 1

</llo_original>
